<compile_context>
chip_gen: v7x
topology: tpu7x:2x2x1
jax: 0.10.0
libtpu: 0.0.40
codegen_flags: <defaults>
</compile_context>

<pallas_src>
import jax
import jax.numpy as jnp
import numpy as np
from jax import lax
from jax.experimental import pallas as pl
from jax.experimental.pallas import tpu as pltpu

STATE_DIM = 16
ACTION_DIM = 4
H1, H2, H3 = 256, 256, 128
HEAD_PAD = 128            # lane-dense width of the folded head matmul
MAX_BATCH_TILE = 1024     # per review: 512-1024 reaches ~85% of roofline
LN_EPS = 1e-5


def _round_up(x, m):
    return ((x + m - 1) // m) * m


def _tensorcores_per_chip():
    """2 on v7x (two TensorCores share the chip), 1 on v5e/v6e.  Safe fallback 1."""
    try:
        kind = jax.devices()[0].device_kind.lower()
    except Exception:
        return 1
    return 2 if ("v7" in kind or "7x" in kind) else 1


def _ln_relu(z, gamma, beta):
    """One-pass LayerNorm over the last dim followed by ReLU (f32)."""
    mu = jnp.mean(z, axis=-1, keepdims=True)
    ms = jnp.mean(z * z, axis=-1, keepdims=True)
    var = ms - mu * mu
    zn = (z - mu) * lax.rsqrt(var + LN_EPS)
    return jnp.maximum(zn * gamma + beta, 0.0)


def qnetwork_kernel(
    x_ref,
    w1_ref, b1_ref, g1_ref, be1_ref,
    w2_ref, b2_ref, g2_ref, be2_ref,
    w3_ref, b3_ref, g3_ref, be3_ref,
    wq_ref, bq_ref,
    out_ref,
):
    bf16 = jnp.bfloat16

    # x f32 -> bf16 cast in-kernel (trivial VPU pack on a 16-lane block).
    x = x_ref[...].astype(bf16)

    # hidden1 -> ln1 -> relu   (bf16 MXU inputs, f32 accumulation / LN)
    z1 = jnp.dot(x, w1_ref[...], preferred_element_type=jnp.float32) + b1_ref[...]
    h1 = _ln_relu(z1, g1_ref[...], be1_ref[...])

    # hidden2 -> ln2 -> relu
    z2 = jnp.dot(h1.astype(bf16), w2_ref[...], preferred_element_type=jnp.float32) + b2_ref[...]
    h2 = _ln_relu(z2, g2_ref[...], be2_ref[...])

    # hidden3 -> ln3 -> relu
    z3 = jnp.dot(h2.astype(bf16), w3_ref[...], preferred_element_type=jnp.float32) + b3_ref[...]
    h3 = _ln_relu(z3, g3_ref[...], be3_ref[...])

    # Dueling heads + combine, folded into one lane-dense matmul.
    # cols [0, ACTION_DIM) already hold q = value + adv - mean(adv).
    y = jnp.dot(h3.astype(bf16), wq_ref[...], preferred_element_type=jnp.float32) + bq_ref[...]

    out_ref[...] = y[:, :ACTION_DIM].astype(out_ref.dtype)


def _pack_params(params):
    """Fold the dueling combine into the head weights (f32) and cast matmul
    weights to bf16 for the MXU fast path.  In real use call this once per
    parameter update, not per forward."""
    (w1, b1, g1, be1, w2, b2, g2, be2, w3, b3, g3, be3, wa, ba, wv, bv) = params
    bf16 = jnp.bfloat16

    # q = val + adv - mean_j(adv) is linear in h3:
    #   Wq[:, j] = Wa[:, j] + wv[:, 0] - mean_j(Wa[:, j])
    #   bq[j]    = ba[j]    + bv       - mean_j(ba[j])
    wq = wa + wv - jnp.mean(wa, axis=1, keepdims=True)        # [H3, ACTION_DIM] f32
    bq = ba + bv - jnp.mean(ba, axis=1, keepdims=True)        # [1, ACTION_DIM]  f32

    # Lane-pad to HEAD_PAD so the head matmul is lane-dense; only the first
    # ACTION_DIM columns are read back in the kernel.
    wq_p = jnp.zeros((H3, HEAD_PAD), jnp.float32).at[:, :ACTION_DIM].set(wq)
    bq_p = jnp.zeros((1, HEAD_PAD), jnp.float32).at[:, :ACTION_DIM].set(bq)

    return (
        w1.astype(bf16), b1, g1, be1,
        w2.astype(bf16), b2, g2, be2,
        w3.astype(bf16), b3, g3, be3,
        wq_p.astype(bf16), bq_p,
    )


def qnetwork_forward(x, params, *, batch_tile=None):
    """Fused Q-network forward pass.  x: [B, state_dim] (or [state_dim]) float32.
    Returns [B, ACTION_DIM] float32 Q-values."""
    if x.ndim == 1:
        x = x[None, :]
    B, sd = x.shape
    assert sd == STATE_DIM

    if batch_tile is None:
        batch_tile = min(MAX_BATCH_TILE, _round_up(B, 8))
        # v7x only: 2 TensorCores -> prefer >= 2 parallel grid steps so both
        # cores get work.  On single-TC chips (v5e/v6e) the grid is a serial
        # loop and splitting would only add per-step overhead.
        if _tensorcores_per_chip() >= 2 and B >= 16:
            if pl.cdiv(_round_up(B, 8), batch_tile) < 2:
                batch_tile = _round_up(pl.cdiv(B, 2), 8)
    assert batch_tile % 8 == 0

    Bp = _round_up(B, batch_tile)
    if Bp != B:
        x = jnp.pad(x, ((0, Bp - B), (0, 0)))

    kparams = _pack_params(params)

    def full_spec(arr):
        # Whole array, constant block index across the grid: Pallas fetches it
        # once and keeps it resident in VMEM (no per-step re-DMA).
        return pl.BlockSpec(arr.shape, lambda i: (0,) * arr.ndim)

    in_specs = [pl.BlockSpec((batch_tile, STATE_DIM), lambda i: (i, 0))]   # x tiled over batch
    in_specs += [full_spec(a) for a in kparams]
    # Narrow output: block last dim == full array last dim -> legal BlockSpec,
    # masked stores but 32x less HBM writeback than a 128-wide f32 slab and no
    # wrapper-side slab slice.
    out_spec = pl.BlockSpec((batch_tile, ACTION_DIM), lambda i: (i, 0))

    out = pl.pallas_call(
        qnetwork_kernel,
        out_shape=jax.ShapeDtypeStruct((Bp, ACTION_DIM), jnp.float32),
        grid=(Bp // batch_tile,),
        in_specs=in_specs,
        out_specs=out_spec,
        compiler_params=pltpu.CompilerParams(
            dimension_semantics=("parallel",)),
    )(x, *kparams)

    return out if Bp == B else out[:B]


# ---------------------------------------------------------------------------
# Deterministic parameter init mimicking the PyTorch module:
#   - Linear weights: Xavier uniform (stored transposed as [in, out])
#   - Linear biases: default PyTorch uniform(-1/sqrt(fan_in), 1/sqrt(fan_in))
#   - LayerNorm: gamma = 1, beta = 0
# ---------------------------------------------------------------------------
def init_params(key):
    def xavier(key, fan_in, fan_out):
        bound = float(np.sqrt(6.0 / (fan_in + fan_out)))
        return jax.random.uniform(key, (fan_in, fan_out), jnp.float32, -bound, bound)

    def bias(key, fan_in, fan_out):
        bound = 1.0 / float(np.sqrt(fan_in))
        return jax.random.uniform(key, (1, fan_out), jnp.float32, -bound, bound)

    ks = jax.random.split(key, 10)
    w1 = xavier(ks[0], STATE_DIM, H1); b1 = bias(ks[1], STATE_DIM, H1)
    w2 = xavier(ks[2], H1, H2);        b2 = bias(ks[3], H1, H2)
    w3 = xavier(ks[4], H2, H3);        b3 = bias(ks[5], H2, H3)
    wa = xavier(ks[6], H3, ACTION_DIM); ba = bias(ks[7], H3, ACTION_DIM)
    wv = xavier(ks[8], H3, 1);          bv = bias(ks[9], H3, 1)

    g1, be1 = jnp.ones((1, H1), jnp.float32), jnp.zeros((1, H1), jnp.float32)
    g2, be2 = jnp.ones((1, H2), jnp.float32), jnp.zeros((1, H2), jnp.float32)
    g3, be3 = jnp.ones((1, H3), jnp.float32), jnp.zeros((1, H3), jnp.float32)

    return (w1, b1, g1, be1, w2, b2, g2, be2, w3, b3, g3, be3, wa, ba, wv, bv)


def reference_forward(x, params):
    """Pure-JAX reference with the original (unfused) dueling head and the same
    numerics regime as the kernel (bf16 matmul inputs, f32 accumulation/LN)."""
    (w1, b1, g1, be1, w2, b2, g2, be2, w3, b3, g3, be3, wa, ba, wv, bv) = params
    bf16 = jnp.bfloat16
    if x.ndim == 1:
        x = x[None, :]

    def ln_relu(z, g, b):
        mu = jnp.mean(z, axis=-1, keepdims=True)
        ms = jnp.mean(z * z, axis=-1, keepdims=True)
        return jnp.maximum((z - mu) * lax.rsqrt(ms - mu * mu + LN_EPS) * g + b, 0.0)

    def mm(a, w):
        return jnp.dot(a.astype(bf16), w.astype(bf16), preferred_element_type=jnp.float32)

    h = ln_relu(mm(x, w1) + b1, g1, be1)
    h = ln_relu(mm(h, w2) + b2, g2, be2)
    h = ln_relu(mm(h, w3) + b3, g3, be3)
    adv = mm(h, wa) + ba
    val = mm(h, wv) + bv
    return val + adv - jnp.mean(adv, axis=1, keepdims=True)


if __name__ == "__main__":
    key = jax.random.PRNGKey(0)
    pkey, xkey = jax.random.split(key)
    params = init_params(pkey)

    # Tolerance covers bf16 matmul inputs + the (exact-in-f32) head-weight fold
    # being rounded to bf16 in a different order than the unfused reference.
    TOL = dict(rtol=2e-2, atol=2e-2)

    # batch of 8
    x = jax.random.normal(xkey, (8, STATE_DIM), dtype=jnp.float32)
    out = jax.block_until_ready(qnetwork_forward(x, params))
    np.testing.assert_allclose(np.asarray(out), np.asarray(reference_forward(x, params)), **TOL)

    # non-multiple-of-8 batch (exercises the padding path)
    x3 = jax.random.normal(jax.random.PRNGKey(1), (3, STATE_DIM), dtype=jnp.float32)
    out3 = jax.block_until_ready(qnetwork_forward(x3, params))
    np.testing.assert_allclose(np.asarray(out3), np.asarray(reference_forward(x3, params)), **TOL)

    # multi-step grid (explicit small tile -> 3 grid steps)
    x24 = jax.random.normal(jax.random.PRNGKey(2), (24, STATE_DIM), dtype=jnp.float32)
    out24 = jax.block_until_ready(qnetwork_forward(x24, params, batch_tile=8))
    np.testing.assert_allclose(np.asarray(out24), np.asarray(reference_forward(x24, params)), **TOL)

    # 1-D state vector (PyTorch unsqueeze path)
    out1 = jax.block_until_ready(qnetwork_forward(x[0], params))
    np.testing.assert_allclose(np.asarray(out1), np.asarray(reference_forward(x, params))[:1], **TOL)

    print("KERNEL_OK")
</pallas_src>

<mosaic_0001>
module attributes {stable_mosaic.version = 11 : i64} {
  func.func @qnetwork_kernel(%arg0: i32, %arg1: memref<8x16xf32, #tpu.memory_space<vmem>>, %arg2: memref<16x256xbf16, #tpu.memory_space<vmem>>, %arg3: memref<1x256xf32, #tpu.memory_space<vmem>>, %arg4: memref<1x256xf32, #tpu.memory_space<vmem>>, %arg5: memref<1x256xf32, #tpu.memory_space<vmem>>, %arg6: memref<256x256xbf16, #tpu.memory_space<vmem>>, %arg7: memref<1x256xf32, #tpu.memory_space<vmem>>, %arg8: memref<1x256xf32, #tpu.memory_space<vmem>>, %arg9: memref<1x256xf32, #tpu.memory_space<vmem>>, %arg10: memref<256x128xbf16, #tpu.memory_space<vmem>>, %arg11: memref<1x128xf32, #tpu.memory_space<vmem>>, %arg12: memref<1x128xf32, #tpu.memory_space<vmem>>, %arg13: memref<1x128xf32, #tpu.memory_space<vmem>>, %arg14: memref<128x128xbf16, #tpu.memory_space<vmem>>, %arg15: memref<1x128xf32, #tpu.memory_space<vmem>>, %arg16: memref<8x4xf32, #tpu.memory_space<vmem>>) attributes {dimension_semantics = [#tpu.dimension_semantics<parallel>], iteration_bounds = array<i64: 1>, scalar_prefetch = 0 : i64, scratch_operands = 0 : i64, tpu.core_type = #tpu.core_type<tc>, window_params = [{transform_indices = @transform_0, window_bounds = array<i64: 8, 16>}, {pipeline_mode = #tpu.pipeline_mode<synchronous>, transform_indices = @transform_1, window_bounds = array<i64: 16, 256>}, {pipeline_mode = #tpu.pipeline_mode<synchronous>, transform_indices = @transform_2, window_bounds = array<i64: 1, 256>}, {pipeline_mode = #tpu.pipeline_mode<synchronous>, transform_indices = @transform_3, window_bounds = array<i64: 1, 256>}, {pipeline_mode = #tpu.pipeline_mode<synchronous>, transform_indices = @transform_4, window_bounds = array<i64: 1, 256>}, {pipeline_mode = #tpu.pipeline_mode<synchronous>, transform_indices = @transform_5, window_bounds = array<i64: 256, 256>}, {pipeline_mode = #tpu.pipeline_mode<synchronous>, transform_indices = @transform_6, window_bounds = array<i64: 1, 256>}, {pipeline_mode = #tpu.pipeline_mode<synchronous>, transform_indices = @transform_7, window_bounds = array<i64: 1, 256>}, {pipeline_mode = #tpu.pipeline_mode<synchronous>, transform_indices = @transform_8, window_bounds = array<i64: 1, 256>}, {pipeline_mode = #tpu.pipeline_mode<synchronous>, transform_indices = @transform_9, window_bounds = array<i64: 256, 128>}, {pipeline_mode = #tpu.pipeline_mode<synchronous>, transform_indices = @transform_10, window_bounds = array<i64: 1, 128>}, {pipeline_mode = #tpu.pipeline_mode<synchronous>, transform_indices = @transform_11, window_bounds = array<i64: 1, 128>}, {pipeline_mode = #tpu.pipeline_mode<synchronous>, transform_indices = @transform_12, window_bounds = array<i64: 1, 128>}, {pipeline_mode = #tpu.pipeline_mode<synchronous>, transform_indices = @transform_13, window_bounds = array<i64: 128, 128>}, {pipeline_mode = #tpu.pipeline_mode<synchronous>, transform_indices = @transform_14, window_bounds = array<i64: 1, 128>}, {transform_indices = @transform_15, window_bounds = array<i64: 8, 4>}]} {
    %c0 = arith.constant 0 : index
    %c0_0 = arith.constant 0 : index
    %0 = vector.load %arg1[%c0, %c0_0] : memref<8x16xf32, #tpu.memory_space<vmem>>, vector<8x16xf32>
    %1 = arith.truncf %0 : vector<8x16xf32> to vector<8x16xbf16>
    %c0_1 = arith.constant 0 : index
    %c0_2 = arith.constant 0 : index
    %2 = vector.load %arg2[%c0_1, %c0_2] : memref<16x256xbf16, #tpu.memory_space<vmem>>, vector<16x256xbf16>
    %cst = arith.constant dense<0.000000e+00> : vector<8x256xf32>
    %3 = tpu.matmul %1, %2, %cst {dimension_numbers = #tpu.dot_dimension_numbers<[1], [0], [0], [1], [0, 0, 1, 1], [], []>} : vector<8x16xbf16>, vector<16x256xbf16>, vector<8x256xf32> -> vector<8x256xf32>
    %c0_3 = arith.constant 0 : index
    %c0_4 = arith.constant 0 : index
    %4 = vector.load %arg3[%c0_3, %c0_4] : memref<1x256xf32, #tpu.memory_space<vmem>>, vector<1x256xf32>
    %5 = vector.broadcast %4 : vector<1x256xf32> to vector<8x256xf32>
    %6 = arith.addf %3, %5 : vector<8x256xf32>
    %c0_5 = arith.constant 0 : index
    %c0_6 = arith.constant 0 : index
    %7 = vector.load %arg4[%c0_5, %c0_6] : memref<1x256xf32, #tpu.memory_space<vmem>>, vector<1x256xf32>
    %c0_7 = arith.constant 0 : index
    %c0_8 = arith.constant 0 : index
    %8 = vector.load %arg5[%c0_7, %c0_8] : memref<1x256xf32, #tpu.memory_space<vmem>>, vector<1x256xf32>
    %cst_9 = arith.constant dense<0.000000e+00> : vector<8xf32>
    %9 = vector.multi_reduction <add>, %6, %cst_9 [1] : vector<8x256xf32> to vector<8xf32>
    %10 = vector.shape_cast %9 : vector<8xf32> to vector<8x1xf32>
    %cst_10 = arith.constant 2.560000e+02 : f32
    %11 = vector.broadcast %cst_10 : f32 to vector<8x1xf32>
    %12 = arith.divf %10, %11 : vector<8x1xf32>
    %13 = arith.mulf %6, %6 : vector<8x256xf32>
    %cst_11 = arith.constant dense<0.000000e+00> : vector<8xf32>
    %14 = vector.multi_reduction <add>, %13, %cst_11 [1] : vector<8x256xf32> to vector<8xf32>
    %15 = vector.shape_cast %14 : vector<8xf32> to vector<8x1xf32>
    %cst_12 = arith.constant 2.560000e+02 : f32
    %16 = vector.broadcast %cst_12 : f32 to vector<8x1xf32>
    %17 = arith.divf %15, %16 : vector<8x1xf32>
    %18 = arith.mulf %12, %12 : vector<8x1xf32>
    %19 = arith.subf %17, %18 : vector<8x1xf32>
    %20 = vector.broadcast %12 : vector<8x1xf32> to vector<8x256xf32>
    %21 = arith.subf %6, %20 : vector<8x256xf32>
    %cst_13 = arith.constant 9.99999974E-6 : f32
    %22 = vector.broadcast %cst_13 : f32 to vector<8x1xf32>
    %23 = arith.addf %19, %22 : vector<8x1xf32>
    %24 = math.rsqrt %23 : vector<8x1xf32>
    %25 = vector.broadcast %24 : vector<8x1xf32> to vector<8x256xf32>
    %26 = arith.mulf %21, %25 : vector<8x256xf32>
    %27 = vector.broadcast %7 : vector<1x256xf32> to vector<8x256xf32>
    %28 = arith.mulf %26, %27 : vector<8x256xf32>
    %29 = vector.broadcast %8 : vector<1x256xf32> to vector<8x256xf32>
    %30 = arith.addf %28, %29 : vector<8x256xf32>
    %cst_14 = arith.constant 0.000000e+00 : f32
    %31 = vector.broadcast %cst_14 : f32 to vector<8x256xf32>
    %32 = arith.maximumf %30, %31 : vector<8x256xf32>
    %33 = arith.truncf %32 : vector<8x256xf32> to vector<8x256xbf16>
    %c0_15 = arith.constant 0 : index
    %c0_16 = arith.constant 0 : index
    %34 = vector.load %arg6[%c0_15, %c0_16] : memref<256x256xbf16, #tpu.memory_space<vmem>>, vector<256x256xbf16>
    %cst_17 = arith.constant dense<0.000000e+00> : vector<8x256xf32>
    %35 = tpu.matmul %33, %34, %cst_17 {dimension_numbers = #tpu.dot_dimension_numbers<[1], [0], [0], [1], [0, 0, 1, 1], [], []>} : vector<8x256xbf16>, vector<256x256xbf16>, vector<8x256xf32> -> vector<8x256xf32>
    %c0_18 = arith.constant 0 : index
    %c0_19 = arith.constant 0 : index
    %36 = vector.load %arg7[%c0_18, %c0_19] : memref<1x256xf32, #tpu.memory_space<vmem>>, vector<1x256xf32>
    %37 = vector.broadcast %36 : vector<1x256xf32> to vector<8x256xf32>
    %38 = arith.addf %35, %37 : vector<8x256xf32>
    %c0_20 = arith.constant 0 : index
    %c0_21 = arith.constant 0 : index
    %39 = vector.load %arg8[%c0_20, %c0_21] : memref<1x256xf32, #tpu.memory_space<vmem>>, vector<1x256xf32>
    %c0_22 = arith.constant 0 : index
    %c0_23 = arith.constant 0 : index
    %40 = vector.load %arg9[%c0_22, %c0_23] : memref<1x256xf32, #tpu.memory_space<vmem>>, vector<1x256xf32>
    %cst_24 = arith.constant dense<0.000000e+00> : vector<8xf32>
    %41 = vector.multi_reduction <add>, %38, %cst_24 [1] : vector<8x256xf32> to vector<8xf32>
    %42 = vector.shape_cast %41 : vector<8xf32> to vector<8x1xf32>
    %cst_25 = arith.constant 2.560000e+02 : f32
    %43 = vector.broadcast %cst_25 : f32 to vector<8x1xf32>
    %44 = arith.divf %42, %43 : vector<8x1xf32>
    %45 = arith.mulf %38, %38 : vector<8x256xf32>
    %cst_26 = arith.constant dense<0.000000e+00> : vector<8xf32>
    %46 = vector.multi_reduction <add>, %45, %cst_26 [1] : vector<8x256xf32> to vector<8xf32>
    %47 = vector.shape_cast %46 : vector<8xf32> to vector<8x1xf32>
    %cst_27 = arith.constant 2.560000e+02 : f32
    %48 = vector.broadcast %cst_27 : f32 to vector<8x1xf32>
    %49 = arith.divf %47, %48 : vector<8x1xf32>
    %50 = arith.mulf %44, %44 : vector<8x1xf32>
    %51 = arith.subf %49, %50 : vector<8x1xf32>
    %52 = vector.broadcast %44 : vector<8x1xf32> to vector<8x256xf32>
    %53 = arith.subf %38, %52 : vector<8x256xf32>
    %cst_28 = arith.constant 9.99999974E-6 : f32
    %54 = vector.broadcast %cst_28 : f32 to vector<8x1xf32>
    %55 = arith.addf %51, %54 : vector<8x1xf32>
    %56 = math.rsqrt %55 : vector<8x1xf32>
    %57 = vector.broadcast %56 : vector<8x1xf32> to vector<8x256xf32>
    %58 = arith.mulf %53, %57 : vector<8x256xf32>
    %59 = vector.broadcast %39 : vector<1x256xf32> to vector<8x256xf32>
    %60 = arith.mulf %58, %59 : vector<8x256xf32>
    %61 = vector.broadcast %40 : vector<1x256xf32> to vector<8x256xf32>
    %62 = arith.addf %60, %61 : vector<8x256xf32>
    %cst_29 = arith.constant 0.000000e+00 : f32
    %63 = vector.broadcast %cst_29 : f32 to vector<8x256xf32>
    %64 = arith.maximumf %62, %63 : vector<8x256xf32>
    %65 = arith.truncf %64 : vector<8x256xf32> to vector<8x256xbf16>
    %c0_30 = arith.constant 0 : index
    %c0_31 = arith.constant 0 : index
    %66 = vector.load %arg10[%c0_30, %c0_31] : memref<256x128xbf16, #tpu.memory_space<vmem>>, vector<256x128xbf16>
    %cst_32 = arith.constant dense<0.000000e+00> : vector<8x128xf32>
    %67 = tpu.matmul %65, %66, %cst_32 {dimension_numbers = #tpu.dot_dimension_numbers<[1], [0], [0], [1], [0, 0, 1, 1], [], []>} : vector<8x256xbf16>, vector<256x128xbf16>, vector<8x128xf32> -> vector<8x128xf32>
    %c0_33 = arith.constant 0 : index
    %c0_34 = arith.constant 0 : index
    %68 = vector.load %arg11[%c0_33, %c0_34] : memref<1x128xf32, #tpu.memory_space<vmem>>, vector<1x128xf32>
    %69 = vector.broadcast %68 : vector<1x128xf32> to vector<8x128xf32>
    %70 = arith.addf %67, %69 : vector<8x128xf32>
    %c0_35 = arith.constant 0 : index
    %c0_36 = arith.constant 0 : index
    %71 = vector.load %arg12[%c0_35, %c0_36] : memref<1x128xf32, #tpu.memory_space<vmem>>, vector<1x128xf32>
    %c0_37 = arith.constant 0 : index
    %c0_38 = arith.constant 0 : index
    %72 = vector.load %arg13[%c0_37, %c0_38] : memref<1x128xf32, #tpu.memory_space<vmem>>, vector<1x128xf32>
    %cst_39 = arith.constant dense<0.000000e+00> : vector<8xf32>
    %73 = vector.multi_reduction <add>, %70, %cst_39 [1] : vector<8x128xf32> to vector<8xf32>
    %74 = vector.shape_cast %73 : vector<8xf32> to vector<8x1xf32>
    %cst_40 = arith.constant 1.280000e+02 : f32
    %75 = vector.broadcast %cst_40 : f32 to vector<8x1xf32>
    %76 = arith.divf %74, %75 : vector<8x1xf32>
    %77 = arith.mulf %70, %70 : vector<8x128xf32>
    %cst_41 = arith.constant dense<0.000000e+00> : vector<8xf32>
    %78 = vector.multi_reduction <add>, %77, %cst_41 [1] : vector<8x128xf32> to vector<8xf32>
    %79 = vector.shape_cast %78 : vector<8xf32> to vector<8x1xf32>
    %cst_42 = arith.constant 1.280000e+02 : f32
    %80 = vector.broadcast %cst_42 : f32 to vector<8x1xf32>
    %81 = arith.divf %79, %80 : vector<8x1xf32>
    %82 = arith.mulf %76, %76 : vector<8x1xf32>
    %83 = arith.subf %81, %82 : vector<8x1xf32>
    %84 = vector.broadcast %76 : vector<8x1xf32> to vector<8x128xf32>
    %85 = arith.subf %70, %84 : vector<8x128xf32>
    %cst_43 = arith.constant 9.99999974E-6 : f32
    %86 = vector.broadcast %cst_43 : f32 to vector<8x1xf32>
    %87 = arith.addf %83, %86 : vector<8x1xf32>
    %88 = math.rsqrt %87 : vector<8x1xf32>
    %89 = vector.broadcast %88 : vector<8x1xf32> to vector<8x128xf32>
    %90 = arith.mulf %85, %89 : vector<8x128xf32>
    %91 = vector.broadcast %71 : vector<1x128xf32> to vector<8x128xf32>
    %92 = arith.mulf %90, %91 : vector<8x128xf32>
    %93 = vector.broadcast %72 : vector<1x128xf32> to vector<8x128xf32>
    %94 = arith.addf %92, %93 : vector<8x128xf32>
    %cst_44 = arith.constant 0.000000e+00 : f32
    %95 = vector.broadcast %cst_44 : f32 to vector<8x128xf32>
    %96 = arith.maximumf %94, %95 : vector<8x128xf32>
    %97 = arith.truncf %96 : vector<8x128xf32> to vector<8x128xbf16>
    %c0_45 = arith.constant 0 : index
    %c0_46 = arith.constant 0 : index
    %98 = vector.load %arg14[%c0_45, %c0_46] : memref<128x128xbf16, #tpu.memory_space<vmem>>, vector<128x128xbf16>
    %cst_47 = arith.constant dense<0.000000e+00> : vector<8x128xf32>
    %99 = tpu.matmul %97, %98, %cst_47 {dimension_numbers = #tpu.dot_dimension_numbers<[1], [0], [0], [1], [0, 0, 1, 1], [], []>} : vector<8x128xbf16>, vector<128x128xbf16>, vector<8x128xf32> -> vector<8x128xf32>
    %c0_48 = arith.constant 0 : index
    %c0_49 = arith.constant 0 : index
    %100 = vector.load %arg15[%c0_48, %c0_49] : memref<1x128xf32, #tpu.memory_space<vmem>>, vector<1x128xf32>
    %101 = vector.broadcast %100 : vector<1x128xf32> to vector<8x128xf32>
    %102 = arith.addf %99, %101 : vector<8x128xf32>
    %103 = vector.extract_strided_slice %102 {offsets = [0, 0], sizes = [8, 4], strides = [1, 1]} : vector<8x128xf32> to vector<8x4xf32>
    %c0_50 = arith.constant 0 : index
    %c0_51 = arith.constant 0 : index
    %104 = vector.load %arg16[%c0_50, %c0_51] : memref<8x4xf32, #tpu.memory_space<vmem>>, vector<8x4xf32>
    tpu.vector_store %arg16[%c0_50, %c0_51], %103 {strides = array<i32>} : memref<8x4xf32, #tpu.memory_space<vmem>>, vector<8x4xf32>,
    return
  }
  func.func @transform_0(%arg0: i32) -> (i32, i32) {
    %c0_i32 = arith.constant 0 : i32
    %c0_i32_0 = arith.constant 0 : i32
    return %arg0, %c0_i32 : i32, i32
  }
  func.func @transform_1(%arg0: i32) -> (i32, i32) {
    %c0_i32 = arith.constant 0 : i32
    %c0_i32_0 = arith.constant 0 : i32
    %c0_i32_1 = arith.constant 0 : i32
    return %c0_i32, %c0_i32_0 : i32, i32
  }
  func.func @transform_2(%arg0: i32) -> (i32, i32) {
    %c0_i32 = arith.constant 0 : i32
    %c0_i32_0 = arith.constant 0 : i32
    %c0_i32_1 = arith.constant 0 : i32
    return %c0_i32, %c0_i32_0 : i32, i32
  }
  func.func @transform_3(%arg0: i32) -> (i32, i32) {
    %c0_i32 = arith.constant 0 : i32
    %c0_i32_0 = arith.constant 0 : i32
    %c0_i32_1 = arith.constant 0 : i32
    return %c0_i32, %c0_i32_0 : i32, i32
  }
  func.func @transform_4(%arg0: i32) -> (i32, i32) {
    %c0_i32 = arith.constant 0 : i32
    %c0_i32_0 = arith.constant 0 : i32
    %c0_i32_1 = arith.constant 0 : i32
    return %c0_i32, %c0_i32_0 : i32, i32
  }
  func.func @transform_5(%arg0: i32) -> (i32, i32) {
    %c0_i32 = arith.constant 0 : i32
    %c0_i32_0 = arith.constant 0 : i32
    %c0_i32_1 = arith.constant 0 : i32
    return %c0_i32, %c0_i32_0 : i32, i32
  }
  func.func @transform_6(%arg0: i32) -> (i32, i32) {
    %c0_i32 = arith.constant 0 : i32
    %c0_i32_0 = arith.constant 0 : i32
    %c0_i32_1 = arith.constant 0 : i32
    return %c0_i32, %c0_i32_0 : i32, i32
  }
  func.func @transform_7(%arg0: i32) -> (i32, i32) {
    %c0_i32 = arith.constant 0 : i32
    %c0_i32_0 = arith.constant 0 : i32
    %c0_i32_1 = arith.constant 0 : i32
    return %c0_i32, %c0_i32_0 : i32, i32
  }
  func.func @transform_8(%arg0: i32) -> (i32, i32) {
    %c0_i32 = arith.constant 0 : i32
    %c0_i32_0 = arith.constant 0 : i32
    %c0_i32_1 = arith.constant 0 : i32
    return %c0_i32, %c0_i32_0 : i32, i32
  }
  func.func @transform_9(%arg0: i32) -> (i32, i32) {
    %c0_i32 = arith.constant 0 : i32
    %c0_i32_0 = arith.constant 0 : i32
    %c0_i32_1 = arith.constant 0 : i32
    return %c0_i32, %c0_i32_0 : i32, i32
  }
  func.func @transform_10(%arg0: i32) -> (i32, i32) {
    %c0_i32 = arith.constant 0 : i32
    %c0_i32_0 = arith.constant 0 : i32
    %c0_i32_1 = arith.constant 0 : i32
    return %c0_i32, %c0_i32_0 : i32, i32
  }
  func.func @transform_11(%arg0: i32) -> (i32, i32) {
    %c0_i32 = arith.constant 0 : i32
    %c0_i32_0 = arith.constant 0 : i32
    %c0_i32_1 = arith.constant 0 : i32
    return %c0_i32, %c0_i32_0 : i32, i32
  }
  func.func @transform_12(%arg0: i32) -> (i32, i32) {
    %c0_i32 = arith.constant 0 : i32
    %c0_i32_0 = arith.constant 0 : i32
    %c0_i32_1 = arith.constant 0 : i32
    return %c0_i32, %c0_i32_0 : i32, i32
  }
  func.func @transform_13(%arg0: i32) -> (i32, i32) {
    %c0_i32 = arith.constant 0 : i32
    %c0_i32_0 = arith.constant 0 : i32
    %c0_i32_1 = arith.constant 0 : i32
    return %c0_i32, %c0_i32_0 : i32, i32
  }
  func.func @transform_14(%arg0: i32) -> (i32, i32) {
    %c0_i32 = arith.constant 0 : i32
    %c0_i32_0 = arith.constant 0 : i32
    %c0_i32_1 = arith.constant 0 : i32
    return %c0_i32, %c0_i32_0 : i32, i32
  }
  func.func @transform_15(%arg0: i32) -> (i32, i32) {
    %c0_i32 = arith.constant 0 : i32
    %c0_i32_0 = arith.constant 0 : i32
    return %arg0, %c0_i32 : i32, i32
  }
}

</mosaic_0001>

<llo_original>
// kernel: tpu_custom_call.1
$region0: #{tpu_custom_call.1}
  #allocation0 [shape = 'u32[]', space=smem, size = 0x4, offset = 0x4, fixed_abs, tag = 'smem constant byte address 0x4 - core index']
  #allocation1 [shape = 'u32[144,128]{1,0:T(1,128)}', space=vmem, size = 0x12000, scoped, tag = 'internal scratch']
  %s0 = inlined_call_operand.hbm [shape: f32[8,16], index: 0, kind: input, shape index: {}]
  %s1 = inlined_call_operand.hbm [shape: bf16[16,256], index: 1, kind: input, shape index: {}]
  %s2 = inlined_call_operand.vmem [shape: f32[1,256], index: 2, kind: input, shape index: {}]
  %s3 = inlined_call_operand.vmem [shape: f32[1,256], index: 3, kind: input, shape index: {}]
  %s4 = inlined_call_operand.vmem [shape: f32[1,256], index: 4, kind: input, shape index: {}]
  %s5 = inlined_call_operand.hbm [shape: bf16[256,256], index: 5, kind: input, shape index: {}]
  %s6 = inlined_call_operand.vmem [shape: f32[1,256], index: 6, kind: input, shape index: {}]
  %s7 = inlined_call_operand.vmem [shape: f32[1,256], index: 7, kind: input, shape index: {}]
  %s8 = inlined_call_operand.vmem [shape: f32[1,256], index: 8, kind: input, shape index: {}]
  %s9 = inlined_call_operand.hbm [shape: bf16[256,128], index: 9, kind: input, shape index: {}]
  %s10 = inlined_call_operand.vmem [shape: f32[1,128], index: 10, kind: input, shape index: {}]
  %s11 = inlined_call_operand.vmem [shape: f32[1,128], index: 11, kind: input, shape index: {}]
  %s12 = inlined_call_operand.vmem [shape: f32[1,128], index: 12, kind: input, shape index: {}]
  %s13 = inlined_call_operand.hbm [shape: bf16[128,128], index: 13, kind: input, shape index: {}]
  %s14 = inlined_call_operand.vmem [shape: f32[1,128], index: 14, kind: input, shape index: {}]
  %s15 = inlined_call_operand.vmem [shape: f32[8,4], index: 15, kind: output, shape index: {}]
  %s16 = sld [smem:[#allocation0]]
  $region90: #{tpu_custom_call.1} parent=0
    _
  %s18 = ssub.s32 1, %s16
  %s19 = scalar_select 0, %s18, %s16
  $region1: #{tpu_custom_call.1} parent=0
    #allocation2 [shape = 'u8[4096]{0}', space=vmem, size = 0x1000, scoped, tag = 'input window, operand 0, single buffered']
    #allocation3 [shape = 's32[1]{0}', space=sflag, size = 0x4, scoped, tag = 'scoped memory for tpu_custom_call.1']
    #allocation4 [shape = 'u8[8192]{0}', space=vmem, size = 0x2000, scoped, tag = 'input window, operand 1, single buffered']
    #allocation5 [shape = 's32[1]{0}', space=sflag, size = 0x4, scoped, tag = 'scoped memory for tpu_custom_call.1']
    #allocation6 [shape = 'u8[131072]{0}', space=vmem, size = 0x20000, scoped, tag = 'input window, operand 5, single buffered']
    #allocation7 [shape = 'u8[65536]{0}', space=vmem, size = 0x10000, scoped, tag = 'input window, operand 9, single buffered']
    #allocation8 [shape = 's32[1]{0}', space=sflag, size = 0x4, scoped, tag = 'scoped memory for tpu_custom_call.1']
    #allocation9 [shape = 'u8[32768]{0}', space=vmem, size = 0x8000, scoped, tag = 'input window, operand 13, single buffered']
    %20 = vsyncpa [#allocation3], 0
    %21 = vsyncpa [#allocation5], 0
    %22 = vsyncpa [#allocation8], 0
    // Predicated region
    $region2: #{tpu_custom_call.1} parent=1 // pred_check
      _
    $region3: #{tpu_custom_call.1} parent=1 // pred_check_branch
      %24 = sbr.rel (0) target = $region5
    $region4: #{tpu_custom_call.1} parent=1 // pred_region
      %s26 = ssub.s32 128, 128
      %27 = vsyncadd [#allocation3], %s26
      %s29 = sshll.u32 [#allocation2], 4
      %s30 = int_to_ptr.vmem [resolvable:$true] %s29
      %32 = dma.hbm_to_vmem [thread:$0]  %s0, 128, %s30, [#allocation3]
    $region5: #{tpu_custom_call.1} parent=1 // pred_fallthru
      _
    // Predicated region
    $region6: #{tpu_custom_call.1} parent=1 // pred_check
      _
    $region7: #{tpu_custom_call.1} parent=1 // pred_check_branch
      %34 = sbr.rel (0) target = $region9
    $region8: #{tpu_custom_call.1} parent=1 // pred_region
      %s36 = ssub.s32 256, 256
      %37 = vsyncadd [#allocation5], %s36
      %s38 = sshll.u32 [#allocation4], 4
      %s39 = int_to_ptr.vmem [resolvable:$true] %s38
      %44 = dma.hbm_to_vmem [thread:$0]  %s1, 256, %s39, [#allocation5], 128, 128, 8
    $region9: #{tpu_custom_call.1} parent=1 // pred_fallthru
      _
    // Predicated region
    $region10: #{tpu_custom_call.1} parent=1 // pred_check
      _
    $region11: #{tpu_custom_call.1} parent=1 // pred_check_branch
      %46 = sbr.rel (0) target = $region13
    $region12: #{tpu_custom_call.1} parent=1 // pred_region
      _
    $region13: #{tpu_custom_call.1} parent=1 // pred_fallthru
      _
    // Predicated region
    $region14: #{tpu_custom_call.1} parent=1 // pred_check
      _
    $region15: #{tpu_custom_call.1} parent=1 // pred_check_branch
      %48 = sbr.rel (0) target = $region17
    $region16: #{tpu_custom_call.1} parent=1 // pred_region
      _
    $region17: #{tpu_custom_call.1} parent=1 // pred_fallthru
      _
    // Predicated region
    $region18: #{tpu_custom_call.1} parent=1 // pred_check
      _
    $region19: #{tpu_custom_call.1} parent=1 // pred_check_branch
      %50 = sbr.rel (0) target = $region21
    $region20: #{tpu_custom_call.1} parent=1 // pred_region
      _
    $region21: #{tpu_custom_call.1} parent=1 // pred_fallthru
      _
    // Predicated region
    $region22: #{tpu_custom_call.1} parent=1 // pred_check
      _
    $region23: #{tpu_custom_call.1} parent=1 // pred_check_branch
      %52 = sbr.rel (0) target = $region25
    $region24: #{tpu_custom_call.1} parent=1 // pred_region
      %s54 = ssub.s32 4096, 4096
      %55 = vsyncadd [#allocation5], %s54
      %s56 = sshll.u32 [#allocation6], 4
      %s57 = int_to_ptr.vmem [resolvable:$true] %s56
      %62 = dma.hbm_to_vmem [thread:$0]  %s5, 4096, %s57, [#allocation5], 128, 128, 8
    $region25: #{tpu_custom_call.1} parent=1 // pred_fallthru
      _
    // Predicated region
    $region26: #{tpu_custom_call.1} parent=1 // pred_check
      _
    $region27: #{tpu_custom_call.1} parent=1 // pred_check_branch
      %64 = sbr.rel (0) target = $region29
    $region28: #{tpu_custom_call.1} parent=1 // pred_region
      _
    $region29: #{tpu_custom_call.1} parent=1 // pred_fallthru
      _
    // Predicated region
    $region30: #{tpu_custom_call.1} parent=1 // pred_check
      _
    $region31: #{tpu_custom_call.1} parent=1 // pred_check_branch
      %66 = sbr.rel (0) target = $region33
    $region32: #{tpu_custom_call.1} parent=1 // pred_region
      _
    $region33: #{tpu_custom_call.1} parent=1 // pred_fallthru
      _
    // Predicated region
    $region34: #{tpu_custom_call.1} parent=1 // pred_check
      _
    $region35: #{tpu_custom_call.1} parent=1 // pred_check_branch
      %68 = sbr.rel (0) target = $region37
    $region36: #{tpu_custom_call.1} parent=1 // pred_region
      _
    $region37: #{tpu_custom_call.1} parent=1 // pred_fallthru
      _
    // Predicated region
    $region38: #{tpu_custom_call.1} parent=1 // pred_check
      _
    $region39: #{tpu_custom_call.1} parent=1 // pred_check_branch
      %70 = sbr.rel (0) target = $region41
    $region40: #{tpu_custom_call.1} parent=1 // pred_region
      %s72 = ssub.s32 2048, 2048
      %73 = vsyncadd [#allocation8], %s72
      %s74 = sshll.u32 [#allocation7], 4
      %s75 = int_to_ptr.vmem [resolvable:$true] %s74
      %80 = dma.hbm_to_vmem [thread:$0]  %s9, 2048, %s75, [#allocation8], 64, 64, 4
    $region41: #{tpu_custom_call.1} parent=1 // pred_fallthru
      _
    // Predicated region
    $region42: #{tpu_custom_call.1} parent=1 // pred_check
      _
    $region43: #{tpu_custom_call.1} parent=1 // pred_check_branch
      %82 = sbr.rel (0) target = $region45
    $region44: #{tpu_custom_call.1} parent=1 // pred_region
      _
    $region45: #{tpu_custom_call.1} parent=1 // pred_fallthru
      _
    // Predicated region
    $region46: #{tpu_custom_call.1} parent=1 // pred_check
      _
    $region47: #{tpu_custom_call.1} parent=1 // pred_check_branch
      %84 = sbr.rel (0) target = $region49
    $region48: #{tpu_custom_call.1} parent=1 // pred_region
      _
    $region49: #{tpu_custom_call.1} parent=1 // pred_fallthru
      _
    // Predicated region
    $region50: #{tpu_custom_call.1} parent=1 // pred_check
      _
    $region51: #{tpu_custom_call.1} parent=1 // pred_check_branch
      %86 = sbr.rel (0) target = $region53
    $region52: #{tpu_custom_call.1} parent=1 // pred_region
      _
    $region53: #{tpu_custom_call.1} parent=1 // pred_fallthru
      _
    // Predicated region
    $region54: #{tpu_custom_call.1} parent=1 // pred_check
      _
    $region55: #{tpu_custom_call.1} parent=1 // pred_check_branch
      %88 = sbr.rel (0) target = $region57
    $region56: #{tpu_custom_call.1} parent=1 // pred_region
      %s90 = ssub.s32 1024, 1024
      %91 = vsyncadd [#allocation8], %s90
      %s92 = sshll.u32 [#allocation9], 4
      %s93 = int_to_ptr.vmem [resolvable:$true] %s92
      %98 = dma.hbm_to_vmem [thread:$0]  %s13, 1024, %s93, [#allocation8], 64, 64, 4
    $region57: #{tpu_custom_call.1} parent=1 // pred_fallthru
      _
    // Predicated region
    $region58: #{tpu_custom_call.1} parent=1 // pred_check
      _
    $region59: #{tpu_custom_call.1} parent=1 // pred_check_branch
      %100 = sbr.rel (0) target = $region61
    $region60: #{tpu_custom_call.1} parent=1 // pred_region
      _
    $region61: #{tpu_custom_call.1} parent=1 // pred_fallthru
      _
    // Predicated region
    $region62: #{tpu_custom_call.1} parent=1 // pred_check
      _
    $region63: #{tpu_custom_call.1} parent=1 // pred_check_branch
      %102 = sbr.rel (0) target = $region65
    $region64: #{tpu_custom_call.1} parent=1 // pred_region
      %103 = dma.done [#allocation3], 128
    $region65: #{tpu_custom_call.1} parent=1 // pred_fallthru
      _
    // Predicated region
    $region66: #{tpu_custom_call.1} parent=1 // pred_check
      _
    $region67: #{tpu_custom_call.1} parent=1 // pred_check_branch
      %105 = sbr.rel (0) target = $region69
    $region68: #{tpu_custom_call.1} parent=1 // pred_region
      %106 = dma.done [#allocation5], 256
    $region69: #{tpu_custom_call.1} parent=1 // pred_fallthru
      _
    // Predicated region
    $region70: #{tpu_custom_call.1} parent=1 // pred_check
      _
    $region71: #{tpu_custom_call.1} parent=1 // pred_check_branch
      %108 = sbr.rel (0) target = $region73
    $region72: #{tpu_custom_call.1} parent=1 // pred_region
      %109 = dma.done [#allocation5], 4096
    $region73: #{tpu_custom_call.1} parent=1 // pred_fallthru
      _
    // Predicated region
    $region74: #{tpu_custom_call.1} parent=1 // pred_check
      _
    $region75: #{tpu_custom_call.1} parent=1 // pred_check_branch
      %111 = sbr.rel (0) target = $region77
    $region76: #{tpu_custom_call.1} parent=1 // pred_region
      %112 = dma.done [#allocation8], 2048
    $region77: #{tpu_custom_call.1} parent=1 // pred_fallthru
      _
    // Predicated region
    $region78: #{tpu_custom_call.1} parent=1 // pred_check
      _
    $region79: #{tpu_custom_call.1} parent=1 // pred_check_branch
      %114 = sbr.rel (0) target = $region81
    $region80: #{tpu_custom_call.1} parent=1 // pred_region
      %115 = dma.done [#allocation8], 1024
    $region81: #{tpu_custom_call.1} parent=1 // pred_fallthru
      _
    %v117 = vld [vmem:[#allocation2] sm:$0xff]
    %v118 = vpack.c.bf16 %v117, %v117
    %v119 = vld [vmem:[#allocation4] sm:$0xff]
    %v120 = vld [vmem:[#allocation4 + $0x8] sm:$0xff]
    %v121 = vld [vmem:[%s2] sm:$0x3]
    %v123 = vlaneseq
    %v124 = vshrl.u32 %v123, 7
    %v125 = vsub.s32 0, %v124
    %v126 = vrot.slane %v121, %v125
    %v127 = vlaneseq
    %v128 = vshrl.u32 %v127, 7
    %v129 = vsub.s32 1, %v128
    %v130 = vrot.slane %v121, %v129
    %v135 = vunpack.c.l.b16 %v119
    %v136 = vunpack.c.h.b16 %v119
    %v137 = vunpack.c.l.b16 %v120
    %v138 = vunpack.c.h.b16 %v120
    %v139 = vpack.c.b16 %v137, %v135
    %v140 = vpack.c.b16 %v138, %v136
    %vm143 = vcmask 130048
    %v145 = vsel %vm143, %v118, 0
    %147 = vmatprep.subr.bf16.mxu0 %v140
    %148 = vmatpush1.bf16.msra.mxu0 %v139
    %149 = vmatprep.subr.bf16.mxu0 0
    %150 = vmatpush1.bf16.msra.mxu0 0
    %151 = vmatprep.subr.bf16.mxu0 0
    %152 = vmatpush1.bf16.msra.mxu0 0
    %153 = vmatprep.subr.bf16.mxu0 0
    %154 = vmatpush1.bf16.msra.mxu0 0
    %155 = vmatprep.subr.bf16.mxu0 0
    %156 = vmatpush1.bf16.msra.mxu0 0
    %157 = vmatprep.subr.bf16.mxu0 0
    %158 = vmatpush1.bf16.msra.mxu0 0
    %159 = vmatprep.subr.bf16.mxu0 0
    %160 = vmatpush1.bf16.msra.mxu0 0
    %161 = vmatprep.subr.bf16.mxu0 0
    %162 = vmatpush1.bf16.msra.mxu0 0
    %163 = vmatprep.subr.bf16.mxu0 0
    %164 = vmatpush1.bf16.msra.mxu0 0
    %165 = vmatprep.subr.bf16.mxu0 0
    %166 = vmatpush1.bf16.msra.mxu0 0
    %167 = vmatprep.subr.bf16.mxu0 0
    %168 = vmatpush1.bf16.msra.mxu0 0
    %169 = vmatprep.subr.bf16.mxu0 0
    %170 = vmatpush1.bf16.msra.mxu0 0
    %171 = vmatprep.subr.bf16.mxu0 0
    %172 = vmatpush1.bf16.msra.mxu0 0
    %173 = vmatprep.subr.bf16.mxu0 0
    %174 = vmatpush1.bf16.msra.mxu0 0
    %175 = vmatprep.subr.bf16.mxu0 0
    %176 = vmatpush1.bf16.msra.mxu0 0
    %177 = vmatprep.subr.bf16.mxu0 0
    %178 = vmatpush1.bf16.msra.mxu0 0
    %179 = vmatprep.mubr.bf16.mxu0 0
    %180 = vmatmul.mubr.bf16.gmra.mrb[0].mxu0 %v145
    %v181 = vpop.f32.mrb[0].mxu0
    %v182 = vadd.f32 %v126, %v181
    %v183 = vpop.f32.mrb[0].mxu0
    %v184 = vadd.f32 %v130, %v183
    %v185 = vpop.f32.mrb[0].mxu0
    %v186 = vpop.f32.mrb[0].mxu0
    %187 = vdwg.mxu0
    %v188 = vld [vmem:[%s3] sm:$0x3]
    %v189 = vld [vmem:[%s4] sm:$0x3]
    %v190 = vadd.f32 %v182, %v184
    %191 = vadd.xlane.f32.xlu0 %v190
    %v192 = vpop.xlane.xlu0 %191
    %v193 = vrcp.pop 256.0
    %v194 = vmul.f32 %v192, %v193
    %v195 = vmul.f32 %v182, %v182
    %v196 = vmul.f32 %v184, %v184
    %v197 = vadd.f32 %v195, %v196
    %198 = vadd.xlane.f32.xlu0 %v197
    %v199 = vpop.xlane.xlu0 %198
    %v200 = vmul.f32 %v199, %v193
    %v201 = vmul.f32 %v194, %v194
    %v202 = vsub.f32 %v200, %v201
    %v203 = vsub.f32 %v182, %v194
    %v204 = vsub.f32 %v184, %v194
    %v205 = vadd.f32 %v202, 1e-05
    %v206 = vrsqrt.pop %v205
    %v207 = vmul.f32 %v203, %v206
    %v208 = vmul.f32 %v204, %v206
    %v210 = vlaneseq
    %v211 = vshrl.u32 %v210, 7
    %v212 = vsub.s32 0, %v211
    %v213 = vrot.slane %v188, %v212
    %v214 = vlaneseq
    %v215 = vshrl.u32 %v214, 7
    %v216 = vsub.s32 1, %v215
    %v217 = vrot.slane %v188, %v216
    %v220 = vmul.f32 %v207, %v213
    %v221 = vmul.f32 %v208, %v217
    %v223 = vlaneseq
    %v224 = vshrl.u32 %v223, 7
    %v225 = vsub.s32 0, %v224
    %v226 = vrot.slane %v189, %v225
    %v227 = vlaneseq
    %v228 = vshrl.u32 %v227, 7
    %v229 = vsub.s32 1, %v228
    %v230 = vrot.slane %v189, %v229
    %v233 = vadd.f32 %v220, %v226
    %v234 = vadd.f32 %v221, %v230
    %v235 = vmax.f32 %v233, 0.0
    %v236 = vmax.f32 %v234, 0.0
    %v237 = vpack.c.bf16 %v235, %v235
    %v238 = vpack.c.bf16 %v236, %v236
    %v239 = vld [vmem:[#allocation6] sm:$0xff]
    %v240 = vld [vmem:[#allocation6 + $0x8] sm:$0xff]
    %v241 = vld [vmem:[#allocation6 + $0x10] sm:$0xff]
    %v242 = vld [vmem:[#allocation6 + $0x18] sm:$0xff]
    %v243 = vld [vmem:[#allocation6 + $0x20] sm:$0xff]
    %v244 = vld [vmem:[#allocation6 + $0x28] sm:$0xff]
    %v245 = vld [vmem:[#allocation6 + $0x30] sm:$0xff]
    %v246 = vld [vmem:[#allocation6 + $0x38] sm:$0xff]
    %v247 = vld [vmem:[#allocation6 + $0x40] sm:$0xff]
    %v248 = vld [vmem:[#allocation6 + $0x48] sm:$0xff]
    %v249 = vld [vmem:[#allocation6 + $0x50] sm:$0xff]
    %v250 = vld [vmem:[#allocation6 + $0x58] sm:$0xff]
    %v251 = vld [vmem:[#allocation6 + $0x60] sm:$0xff]
    %v252 = vld [vmem:[#allocation6 + $0x68] sm:$0xff]
    %v253 = vld [vmem:[#allocation6 + $0x70] sm:$0xff]
    %v254 = vld [vmem:[#allocation6 + $0x78] sm:$0xff]
    %v255 = vld [vmem:[#allocation6 + $0x80] sm:$0xff]
    %v256 = vld [vmem:[#allocation6 + $0x88] sm:$0xff]
    %v257 = vld [vmem:[#allocation6 + $0x90] sm:$0xff]
    %v258 = vld [vmem:[#allocation6 + $0x98] sm:$0xff]
    %v259 = vld [vmem:[#allocation6 + $0xa0] sm:$0xff]
    %v260 = vld [vmem:[#allocation6 + $0xa8] sm:$0xff]
    %v261 = vld [vmem:[#allocation6 + $0xb0] sm:$0xff]
    %v262 = vld [vmem:[#allocation6 + $0xb8] sm:$0xff]
    %v263 = vld [vmem:[#allocation6 + $0xc0] sm:$0xff]
    %v264 = vld [vmem:[#allocation6 + $0xc8] sm:$0xff]
    %v265 = vld [vmem:[#allocation6 + $0xd0] sm:$0xff]
    %v266 = vld [vmem:[#allocation6 + $0xd8] sm:$0xff]
    %v267 = vld [vmem:[#allocation6 + $0xe0] sm:$0xff]
    %v268 = vld [vmem:[#allocation6 + $0xe8] sm:$0xff]
    %v269 = vld [vmem:[#allocation6 + $0xf0] sm:$0xff]
    %v270 = vld [vmem:[#allocation6 + $0xf8] sm:$0xff]
    %v271 = vld [vmem:[%s6] sm:$0x3]
    %v273 = vlaneseq
    %v274 = vshrl.u32 %v273, 7
    %v275 = vsub.s32 0, %v274
    %v276 = vrot.slane %v271, %v275
    %v277 = vlaneseq
    %v278 = vshrl.u32 %v277, 7
    %v279 = vsub.s32 1, %v278
    %v280 = vrot.slane %v271, %v279
    %v315 = vunpack.c.l.b16 %v239
    %v316 = vunpack.c.h.b16 %v239
    %v317 = vunpack.c.l.b16 %v240
    %v318 = vunpack.c.h.b16 %v240
    %v319 = vunpack.c.l.b16 %v241
    %v320 = vunpack.c.h.b16 %v241
    %v321 = vunpack.c.l.b16 %v242
    %v322 = vunpack.c.h.b16 %v242
    %v323 = vunpack.c.l.b16 %v243
    %v324 = vunpack.c.h.b16 %v243
    %v325 = vunpack.c.l.b16 %v244
    %v326 = vunpack.c.h.b16 %v244
    %v327 = vunpack.c.l.b16 %v245
    %v328 = vunpack.c.h.b16 %v245
    %v329 = vunpack.c.l.b16 %v246
    %v330 = vunpack.c.h.b16 %v246
    %v331 = vunpack.c.l.b16 %v247
    %v332 = vunpack.c.h.b16 %v247
    %v333 = vunpack.c.l.b16 %v248
    %v334 = vunpack.c.h.b16 %v248
    %v335 = vunpack.c.l.b16 %v249
    %v336 = vunpack.c.h.b16 %v249
    %v337 = vunpack.c.l.b16 %v250
    %v338 = vunpack.c.h.b16 %v250
    %v339 = vunpack.c.l.b16 %v251
    %v340 = vunpack.c.h.b16 %v251
    %v341 = vunpack.c.l.b16 %v252
    %v342 = vunpack.c.h.b16 %v252
    %v343 = vunpack.c.l.b16 %v253
    %v344 = vunpack.c.h.b16 %v253
    %v345 = vunpack.c.l.b16 %v254
    %v346 = vunpack.c.h.b16 %v254
    %v347 = vunpack.c.l.b16 %v255
    %v348 = vunpack.c.h.b16 %v255
    %v349 = vunpack.c.l.b16 %v256
    %v350 = vunpack.c.h.b16 %v256
    %v351 = vunpack.c.l.b16 %v257
    %v352 = vunpack.c.h.b16 %v257
    %v353 = vunpack.c.l.b16 %v258
    %v354 = vunpack.c.h.b16 %v258
    %v355 = vunpack.c.l.b16 %v259
    %v356 = vunpack.c.h.b16 %v259
    %v357 = vunpack.c.l.b16 %v260
    %v358 = vunpack.c.h.b16 %v260
    %v359 = vunpack.c.l.b16 %v261
    %v360 = vunpack.c.h.b16 %v261
    %v361 = vunpack.c.l.b16 %v262
    %v362 = vunpack.c.h.b16 %v262
    %v363 = vunpack.c.l.b16 %v263
    %v364 = vunpack.c.h.b16 %v263
    %v365 = vunpack.c.l.b16 %v264
    %v366 = vunpack.c.h.b16 %v264
    %v367 = vunpack.c.l.b16 %v265
    %v368 = vunpack.c.h.b16 %v265
    %v369 = vunpack.c.l.b16 %v266
    %v370 = vunpack.c.h.b16 %v266
    %v371 = vunpack.c.l.b16 %v267
    %v372 = vunpack.c.h.b16 %v267
    %v373 = vunpack.c.l.b16 %v268
    %v374 = vunpack.c.h.b16 %v268
    %v375 = vunpack.c.l.b16 %v269
    %v376 = vunpack.c.h.b16 %v269
    %v377 = vunpack.c.l.b16 %v270
    %v378 = vunpack.c.h.b16 %v270
    %v379 = vpack.c.b16 %v317, %v315
    %v380 = vpack.c.b16 %v318, %v316
    %v381 = vpack.c.b16 %v321, %v319
    %v382 = vpack.c.b16 %v322, %v320
    %v383 = vpack.c.b16 %v325, %v323
    %v384 = vpack.c.b16 %v326, %v324
    %v385 = vpack.c.b16 %v329, %v327
    %v386 = vpack.c.b16 %v330, %v328
    %v387 = vpack.c.b16 %v333, %v331
    %v388 = vpack.c.b16 %v334, %v332
    %v389 = vpack.c.b16 %v337, %v335
    %v390 = vpack.c.b16 %v338, %v336
    %v391 = vpack.c.b16 %v341, %v339
    %v392 = vpack.c.b16 %v342, %v340
    %v393 = vpack.c.b16 %v345, %v343
    %v394 = vpack.c.b16 %v346, %v344
    %v395 = vpack.c.b16 %v349, %v347
    %v396 = vpack.c.b16 %v350, %v348
    %v397 = vpack.c.b16 %v353, %v351
    %v398 = vpack.c.b16 %v354, %v352
    %v399 = vpack.c.b16 %v357, %v355
    %v400 = vpack.c.b16 %v358, %v356
    %v401 = vpack.c.b16 %v361, %v359
    %v402 = vpack.c.b16 %v362, %v360
    %v403 = vpack.c.b16 %v365, %v363
    %v404 = vpack.c.b16 %v366, %v364
    %v405 = vpack.c.b16 %v369, %v367
    %v406 = vpack.c.b16 %v370, %v368
    %v407 = vpack.c.b16 %v373, %v371
    %v408 = vpack.c.b16 %v374, %v372
    %v409 = vpack.c.b16 %v377, %v375
    %v410 = vpack.c.b16 %v378, %v376
    %443 = vmatprep.subr.bf16.mxu0 %v380
    %444 = vmatpush1.bf16.msra.mxu0 %v379
    %445 = vmatprep.subr.bf16.mxu0 %v382
    %446 = vmatpush1.bf16.msra.mxu0 %v381
    %447 = vmatprep.subr.bf16.mxu0 %v384
    %448 = vmatpush1.bf16.msra.mxu0 %v383
    %449 = vmatprep.subr.bf16.mxu0 %v386
    %450 = vmatpush1.bf16.msra.mxu0 %v385
    %451 = vmatprep.subr.bf16.mxu0 %v388
    %452 = vmatpush1.bf16.msra.mxu0 %v387
    %453 = vmatprep.subr.bf16.mxu0 %v390
    %454 = vmatpush1.bf16.msra.mxu0 %v389
    %455 = vmatprep.subr.bf16.mxu0 %v392
    %456 = vmatpush1.bf16.msra.mxu0 %v391
    %457 = vmatprep.subr.bf16.mxu0 %v394
    %458 = vmatpush1.bf16.msra.mxu0 %v393
    %459 = vmatprep.subr.bf16.mxu0 %v396
    %460 = vmatpush1.bf16.msra.mxu0 %v395
    %461 = vmatprep.subr.bf16.mxu0 %v398
    %462 = vmatpush1.bf16.msra.mxu0 %v397
    %463 = vmatprep.subr.bf16.mxu0 %v400
    %464 = vmatpush1.bf16.msra.mxu0 %v399
    %465 = vmatprep.subr.bf16.mxu0 %v402
    %466 = vmatpush1.bf16.msra.mxu0 %v401
    %467 = vmatprep.subr.bf16.mxu0 %v404
    %468 = vmatpush1.bf16.msra.mxu0 %v403
    %469 = vmatprep.subr.bf16.mxu0 %v406
    %470 = vmatpush1.bf16.msra.mxu0 %v405
    %471 = vmatprep.subr.bf16.mxu0 %v408
    %472 = vmatpush1.bf16.msra.mxu0 %v407
    %473 = vmatprep.subr.bf16.mxu0 %v410
    %474 = vmatpush1.bf16.msra.mxu0 %v409
    %475 = vmatprep.mubr.bf16.mxu0 %v238
    %476 = vmatmul.mubr.bf16.gmra.mrb[0].mxu0 %v237
    %v477 = vpop.f32.mrb[0].mxu0
    %v478 = vadd.f32 %v276, %v477
    %v479 = vpop.f32.mrb[0].mxu0
    %v480 = vadd.f32 %v280, %v479
    %v481 = vpop.f32.mrb[0].mxu0
    %v482 = vpop.f32.mrb[0].mxu0
    %483 = vdwg.mxu0
    %v484 = vld [vmem:[%s7] sm:$0x3]
    %v485 = vld [vmem:[%s8] sm:$0x3]
    %v486 = vadd.f32 %v478, %v480
    %487 = vadd.xlane.f32.xlu0 %v486
    %v488 = vpop.xlane.xlu0 %487
    %v489 = vmul.f32 %v488, %v193
    %v490 = vmul.f32 %v478, %v478
    %v491 = vmul.f32 %v480, %v480
    %v492 = vadd.f32 %v490, %v491
    %493 = vadd.xlane.f32.xlu0 %v492
    %v494 = vpop.xlane.xlu0 %493
    %v495 = vmul.f32 %v494, %v193
    %v496 = vmul.f32 %v489, %v489
    %v497 = vsub.f32 %v495, %v496
    %v498 = vsub.f32 %v478, %v489
    %v499 = vsub.f32 %v480, %v489
    %v500 = vadd.f32 %v497, 1e-05
    %v501 = vrsqrt.pop %v500
    %v502 = vmul.f32 %v498, %v501
    %v503 = vmul.f32 %v499, %v501
    %v505 = vlaneseq
    %v506 = vshrl.u32 %v505, 7
    %v507 = vsub.s32 0, %v506
    %v508 = vrot.slane %v484, %v507
    %v509 = vlaneseq
    %v510 = vshrl.u32 %v509, 7
    %v511 = vsub.s32 1, %v510
    %v512 = vrot.slane %v484, %v511
    %v515 = vmul.f32 %v502, %v508
    %v516 = vmul.f32 %v503, %v512
    %v518 = vlaneseq
    %v519 = vshrl.u32 %v518, 7
    %v520 = vsub.s32 0, %v519
    %v521 = vrot.slane %v485, %v520
    %v522 = vlaneseq
    %v523 = vshrl.u32 %v522, 7
    %v524 = vsub.s32 1, %v523
    %v525 = vrot.slane %v485, %v524
    %v528 = vadd.f32 %v515, %v521
    %v529 = vadd.f32 %v516, %v525
    %v530 = vmax.f32 %v528, 0.0
    %v531 = vmax.f32 %v529, 0.0
    %v532 = vpack.c.bf16 %v530, %v530
    %v533 = vpack.c.bf16 %v531, %v531
    %v534 = vld [vmem:[#allocation7] sm:$0xf]
    %v535 = vld [vmem:[#allocation7 + $0x4] sm:$0xf]
    %v536 = vld [vmem:[#allocation7 + $0x8] sm:$0xf]
    %v537 = vld [vmem:[#allocation7 + $0xc] sm:$0xf]
    %v538 = vld [vmem:[#allocation7 + $0x10] sm:$0xf]
    %v539 = vld [vmem:[#allocation7 + $0x14] sm:$0xf]
    %v540 = vld [vmem:[#allocation7 + $0x18] sm:$0xf]
    %v541 = vld [vmem:[#allocation7 + $0x1c] sm:$0xf]
    %v542 = vld [vmem:[#allocation7 + $0x20] sm:$0xf]
    %v543 = vld [vmem:[#allocation7 + $0x24] sm:$0xf]
    %v544 = vld [vmem:[#allocation7 + $0x28] sm:$0xf]
    %v545 = vld [vmem:[#allocation7 + $0x2c] sm:$0xf]
    %v546 = vld [vmem:[#allocation7 + $0x30] sm:$0xf]
    %v547 = vld [vmem:[#allocation7 + $0x34] sm:$0xf]
    %v548 = vld [vmem:[#allocation7 + $0x38] sm:$0xf]
    %v549 = vld [vmem:[#allocation7 + $0x3c] sm:$0xf]
    %v550 = vld [vmem:[#allocation7 + $0x40] sm:$0xf]
    %v551 = vld [vmem:[#allocation7 + $0x44] sm:$0xf]
    %v552 = vld [vmem:[#allocation7 + $0x48] sm:$0xf]
    %v553 = vld [vmem:[#allocation7 + $0x4c] sm:$0xf]
    %v554 = vld [vmem:[#allocation7 + $0x50] sm:$0xf]
    %v555 = vld [vmem:[#allocation7 + $0x54] sm:$0xf]
    %v556 = vld [vmem:[#allocation7 + $0x58] sm:$0xf]
    %v557 = vld [vmem:[#allocation7 + $0x5c] sm:$0xf]
    %v558 = vld [vmem:[#allocation7 + $0x60] sm:$0xf]
    %v559 = vld [vmem:[#allocation7 + $0x64] sm:$0xf]
    %v560 = vld [vmem:[#allocation7 + $0x68] sm:$0xf]
    %v561 = vld [vmem:[#allocation7 + $0x6c] sm:$0xf]
    %v562 = vld [vmem:[#allocation7 + $0x70] sm:$0xf]
    %v563 = vld [vmem:[#allocation7 + $0x74] sm:$0xf]
    %v564 = vld [vmem:[#allocation7 + $0x78] sm:$0xf]
    %v565 = vld [vmem:[#allocation7 + $0x7c] sm:$0xf]
    %v566 = vld [vmem:[%s10] sm:$0x1]
    %v568 = vlaneseq
    %v569 = vshrl.u32 %v568, 7
    %v570 = vsub.s32 0, %v569
    %v571 = vrot.slane %v566, %v570
    %v605 = vunpack.c.l.b16 %v534
    %v606 = vunpack.c.l.b16 %v535
    %v607 = vunpack.c.l.b16 %v536
    %v608 = vunpack.c.l.b16 %v537
    %v609 = vunpack.c.l.b16 %v538
    %v610 = vunpack.c.l.b16 %v539
    %v611 = vunpack.c.l.b16 %v540
    %v612 = vunpack.c.l.b16 %v541
    %v613 = vunpack.c.l.b16 %v542
    %v614 = vunpack.c.l.b16 %v543
    %v615 = vunpack.c.l.b16 %v544
    %v616 = vunpack.c.l.b16 %v545
    %v617 = vunpack.c.l.b16 %v546
    %v618 = vunpack.c.l.b16 %v547
    %v619 = vunpack.c.l.b16 %v548
    %v620 = vunpack.c.l.b16 %v549
    %v621 = vunpack.c.l.b16 %v550
    %v622 = vunpack.c.l.b16 %v551
    %v623 = vunpack.c.l.b16 %v552
    %v624 = vunpack.c.l.b16 %v553
    %v625 = vunpack.c.l.b16 %v554
    %v626 = vunpack.c.l.b16 %v555
    %v627 = vunpack.c.l.b16 %v556
    %v628 = vunpack.c.l.b16 %v557
    %v629 = vunpack.c.l.b16 %v558
    %v630 = vunpack.c.l.b16 %v559
    %v631 = vunpack.c.l.b16 %v560
    %v632 = vunpack.c.l.b16 %v561
    %v633 = vunpack.c.l.b16 %v562
    %v634 = vunpack.c.l.b16 %v563
    %v635 = vunpack.c.l.b16 %v564
    %v636 = vunpack.c.l.b16 %v565
    %v637 = vpack.c.b16 %v606, %v605
    %v638 = vpack.c.b16 %v608, %v607
    %v639 = vpack.c.b16 %v610, %v609
    %v640 = vpack.c.b16 %v612, %v611
    %v641 = vpack.c.b16 %v614, %v613
    %v642 = vpack.c.b16 %v616, %v615
    %v643 = vpack.c.b16 %v618, %v617
    %v644 = vpack.c.b16 %v620, %v619
    %v645 = vpack.c.b16 %v622, %v621
    %v646 = vpack.c.b16 %v624, %v623
    %v647 = vpack.c.b16 %v626, %v625
    %v648 = vpack.c.b16 %v628, %v627
    %v649 = vpack.c.b16 %v630, %v629
    %v650 = vpack.c.b16 %v632, %v631
    %v651 = vpack.c.b16 %v634, %v633
    %v652 = vpack.c.b16 %v636, %v635
    %669 = vmatprep.subr.bf16.mxu0 0
    %670 = vmatpush1.bf16.msra.mxu0 %v637
    %671 = vmatprep.subr.bf16.mxu0 0
    %672 = vmatpush1.bf16.msra.mxu0 %v638
    %673 = vmatprep.subr.bf16.mxu0 0
    %674 = vmatpush1.bf16.msra.mxu0 %v639
    %675 = vmatprep.subr.bf16.mxu0 0
    %676 = vmatpush1.bf16.msra.mxu0 %v640
    %677 = vmatprep.subr.bf16.mxu0 0
    %678 = vmatpush1.bf16.msra.mxu0 %v641
    %679 = vmatprep.subr.bf16.mxu0 0
    %680 = vmatpush1.bf16.msra.mxu0 %v642
    %681 = vmatprep.subr.bf16.mxu0 0
    %682 = vmatpush1.bf16.msra.mxu0 %v643
    %683 = vmatprep.subr.bf16.mxu0 0
    %684 = vmatpush1.bf16.msra.mxu0 %v644
    %685 = vmatprep.subr.bf16.mxu0 0
    %686 = vmatpush1.bf16.msra.mxu0 %v645
    %687 = vmatprep.subr.bf16.mxu0 0
    %688 = vmatpush1.bf16.msra.mxu0 %v646
    %689 = vmatprep.subr.bf16.mxu0 0
    %690 = vmatpush1.bf16.msra.mxu0 %v647
    %691 = vmatprep.subr.bf16.mxu0 0
    %692 = vmatpush1.bf16.msra.mxu0 %v648
    %693 = vmatprep.subr.bf16.mxu0 0
    %694 = vmatpush1.bf16.msra.mxu0 %v649
    %695 = vmatprep.subr.bf16.mxu0 0
    %696 = vmatpush1.bf16.msra.mxu0 %v650
    %697 = vmatprep.subr.bf16.mxu0 0
    %698 = vmatpush1.bf16.msra.mxu0 %v651
    %699 = vmatprep.subr.bf16.mxu0 0
    %700 = vmatpush1.bf16.msra.mxu0 %v652
    %701 = vmatprep.mubr.bf16.mxu0 %v533
    %702 = vmatmul.mubr.bf16.gmra.mrb[0].mxu0 %v532
    %v703 = vpop.f32.mrb[0].mxu0
    %v704 = vadd.f32 %v571, %v703
    %v705 = vpop.f32.mrb[0].mxu0
    %v706 = vpop.f32.mrb[0].mxu0
    %v707 = vpop.f32.mrb[0].mxu0
    %708 = vdwg.mxu0
    %v709 = vld [vmem:[%s11] sm:$0x1]
    %v710 = vld [vmem:[%s12] sm:$0x1]
    %711 = vadd.xlane.f32.xlu0 %v704
    %v712 = vpop.xlane.xlu0 %711
    %v713 = vrcp.pop 128.0
    %v714 = vmul.f32 %v712, %v713
    %v715 = vmul.f32 %v704, %v704
    %716 = vadd.xlane.f32.xlu0 %v715
    %v717 = vpop.xlane.xlu0 %716
    %v718 = vmul.f32 %v717, %v713
    %v719 = vmul.f32 %v714, %v714
    %v720 = vsub.f32 %v718, %v719
    %v721 = vsub.f32 %v704, %v714
    %v722 = vadd.f32 %v720, 1e-05
    %v723 = vrsqrt.pop %v722
    %v724 = vmul.f32 %v721, %v723
    %v726 = vlaneseq
    %v727 = vshrl.u32 %v726, 7
    %v728 = vsub.s32 0, %v727
    %v729 = vrot.slane %v709, %v728
    %v731 = vmul.f32 %v724, %v729
    %v733 = vlaneseq
    %v734 = vshrl.u32 %v733, 7
    %v735 = vsub.s32 0, %v734
    %v736 = vrot.slane %v710, %v735
    %v738 = vadd.f32 %v731, %v736
    %v739 = vmax.f32 %v738, 0.0
    %v740 = vpack.c.bf16 %v739, %v739
    %v741 = vld [vmem:[#allocation9] sm:$0xf]
    %v742 = vld [vmem:[#allocation9 + $0x4] sm:$0xf]
    %v743 = vld [vmem:[#allocation9 + $0x8] sm:$0xf]
    %v744 = vld [vmem:[#allocation9 + $0xc] sm:$0xf]
    %v745 = vld [vmem:[#allocation9 + $0x10] sm:$0xf]
    %v746 = vld [vmem:[#allocation9 + $0x14] sm:$0xf]
    %v747 = vld [vmem:[#allocation9 + $0x18] sm:$0xf]
    %v748 = vld [vmem:[#allocation9 + $0x1c] sm:$0xf]
    %v749 = vld [vmem:[#allocation9 + $0x20] sm:$0xf]
    %v750 = vld [vmem:[#allocation9 + $0x24] sm:$0xf]
    %v751 = vld [vmem:[#allocation9 + $0x28] sm:$0xf]
    %v752 = vld [vmem:[#allocation9 + $0x2c] sm:$0xf]
    %v753 = vld [vmem:[#allocation9 + $0x30] sm:$0xf]
    %v754 = vld [vmem:[#allocation9 + $0x34] sm:$0xf]
    %v755 = vld [vmem:[#allocation9 + $0x38] sm:$0xf]
    %v756 = vld [vmem:[#allocation9 + $0x3c] sm:$0xf]
    %v757 = vld [vmem:[%s14] sm:$0x1]
    %v759 = vlaneseq
    %v760 = vshrl.u32 %v759, 7
    %v761 = vsub.s32 0, %v760
    %v762 = vrot.slane %v757, %v761
    %v780 = vunpack.c.l.b16 %v741
    %v781 = vunpack.c.l.b16 %v742
    %v782 = vunpack.c.l.b16 %v743
    %v783 = vunpack.c.l.b16 %v744
    %v784 = vunpack.c.l.b16 %v745
    %v785 = vunpack.c.l.b16 %v746
    %v786 = vunpack.c.l.b16 %v747
    %v787 = vunpack.c.l.b16 %v748
    %v788 = vunpack.c.l.b16 %v749
    %v789 = vunpack.c.l.b16 %v750
    %v790 = vunpack.c.l.b16 %v751
    %v791 = vunpack.c.l.b16 %v752
    %v792 = vunpack.c.l.b16 %v753
    %v793 = vunpack.c.l.b16 %v754
    %v794 = vunpack.c.l.b16 %v755
    %v795 = vunpack.c.l.b16 %v756
    %v796 = vpack.c.b16 %v781, %v780
    %v797 = vpack.c.b16 %v783, %v782
    %v798 = vpack.c.b16 %v785, %v784
    %v799 = vpack.c.b16 %v787, %v786
    %v800 = vpack.c.b16 %v789, %v788
    %v801 = vpack.c.b16 %v791, %v790
    %v802 = vpack.c.b16 %v793, %v792
    %v803 = vpack.c.b16 %v795, %v794
    %812 = vmatprep.subr.bf16.mxu0 0
    %813 = vmatpush1.bf16.msra.mxu0 %v796
    %814 = vmatprep.subr.bf16.mxu0 0
    %815 = vmatpush1.bf16.msra.mxu0 %v797
    %816 = vmatprep.subr.bf16.mxu0 0
    %817 = vmatpush1.bf16.msra.mxu0 %v798
    %818 = vmatprep.subr.bf16.mxu0 0
    %819 = vmatpush1.bf16.msra.mxu0 %v799
    %820 = vmatprep.subr.bf16.mxu0 0
    %821 = vmatpush1.bf16.msra.mxu0 %v800
    %822 = vmatprep.subr.bf16.mxu0 0
    %823 = vmatpush1.bf16.msra.mxu0 %v801
    %824 = vmatprep.subr.bf16.mxu0 0
    %825 = vmatpush1.bf16.msra.mxu0 %v802
    %826 = vmatprep.subr.bf16.mxu0 0
    %827 = vmatpush1.bf16.msra.mxu0 %v803
    %828 = vmatprep.subr.bf16.mxu0 0
    %829 = vmatpush1.bf16.msra.mxu0 0
    %830 = vmatprep.subr.bf16.mxu0 0
    %831 = vmatpush1.bf16.msra.mxu0 0
    %832 = vmatprep.subr.bf16.mxu0 0
    %833 = vmatpush1.bf16.msra.mxu0 0
    %834 = vmatprep.subr.bf16.mxu0 0
    %835 = vmatpush1.bf16.msra.mxu0 0
    %836 = vmatprep.subr.bf16.mxu0 0
    %837 = vmatpush1.bf16.msra.mxu0 0
    %838 = vmatprep.subr.bf16.mxu0 0
    %839 = vmatpush1.bf16.msra.mxu0 0
    %840 = vmatprep.subr.bf16.mxu0 0
    %841 = vmatpush1.bf16.msra.mxu0 0
    %842 = vmatprep.subr.bf16.mxu0 0
    %843 = vmatpush1.bf16.msra.mxu0 0
    %844 = vmatprep.mubr.bf16.mxu0 0
    %845 = vmatmul.mubr.bf16.gmra.mrb[0].mxu0 %v740
    %v846 = vpop.f32.mrb[0].mxu0
    %v847 = vadd.f32 %v762, %v846
    %v848 = vpop.f32.mrb[0].mxu0
    %v849 = vpop.f32.mrb[0].mxu0
    %v850 = vpop.f32.mrb[0].mxu0
    %851 = vdwg.mxu0
    %vm852 = vcmask 31744
    %853 = vst.msk [vmem:[%s15] sm:$0xff] %vm852, %v847
    // Predicated region
    $region82: #{tpu_custom_call.1} parent=1 // pred_check
      _
    $region83: #{tpu_custom_call.1} parent=1 // pred_check_branch
      %855 = sbr.rel (0) target = $region85
    $region84: #{tpu_custom_call.1} parent=1 // pred_region
      _
    $region85: #{tpu_custom_call.1} parent=1 // pred_fallthru
      _
    // Predicated region
    $region86: #{tpu_custom_call.1} parent=1 // pred_check
      _
    $region87: #{tpu_custom_call.1} parent=1 // pred_check_branch
      %857 = sbr.rel (0) target = $region89
    $region88: #{tpu_custom_call.1} parent=1 // pred_region
      _
    $region89: #{tpu_custom_call.1} parent=1 // pred_fallthru
      _
    %858 = vsyncpa [#allocation3], 1
    %859 = vsyncpa [#allocation5], 1
    %860 = vsyncpa [#allocation8], 1

</llo_original>
